<compile_context>
chip_gen: v5e
topology: v5e:2x2
jax: 0.10.0
libtpu: 0.0.40
codegen_flags: <defaults>
</compile_context>

<pallas_src>
import jax
import jax.numpy as jnp
from jax.experimental import pallas as pl
from jax.experimental.pallas import tpu as pltpu


def _round_up(x: int, m: int) -> int:
    return ((x + m - 1) // m) * m


def _make_fm_interaction_kernel(num_sparse: int):
    """Build a kernel for a fixed number of sparse features.

    Ref layout (inputs then outputs):
      dense, sparse_0..sparse_{F-1}, w_dense, w_sparse_0..w_sparse_{F-1}, bias,
      deep_out, fm_out
    """

    def kernel(*refs):
        dense_ref = refs[0]
        sparse_refs = refs[1:1 + num_sparse]
        w_dense_ref = refs[1 + num_sparse]
        w_sparse_refs = refs[2 + num_sparse:2 + 2 * num_sparse]
        bias_ref = refs[2 + 2 * num_sparse]
        deep_ref = refs[3 + 2 * num_sparse]
        fm_ref = refs[4 + 2 * num_sparse]

        dense = dense_ref[...]                                   # (TB, D)

        # --- DeepFM deep interaction, Linear split across input chunks ------
        acc = jnp.dot(dense, w_dense_ref[...],
                      preferred_element_type=jnp.float32)        # (TB, DI)
        # --- FactorizationMachine sums, accumulated per chunk ---------------
        s = jnp.sum(dense, axis=1, keepdims=True)                # (TB, 1)
        ss = jnp.sum(dense * dense, axis=1, keepdims=True)       # (TB, 1)

        for sp_ref, w_ref in zip(sparse_refs, w_sparse_refs):
            sp = sp_ref[...]                                     # (TB, Df)
            acc = acc + jnp.dot(sp, w_ref[...],
                                preferred_element_type=jnp.float32)
            s = s + jnp.sum(sp, axis=1, keepdims=True)
            ss = ss + jnp.sum(sp * sp, axis=1, keepdims=True)

        deep = jnp.maximum(acc + bias_ref[...], 0.0)             # (TB, DI)
        fm = 0.5 * (s * s - ss)                                  # (TB, 1)

        deep_ref[...] = deep.astype(deep_ref.dtype)
        fm_ref[...] = fm.astype(fm_ref.dtype)

    return kernel


def fm_interaction_arch(dense_features, sparse_values_per_key, weight_t, bias,
                        *, batch_tile: int = 512):
    """dense_features: (B, D); sparse_values_per_key: list of (B, Df);
    weight_t: (fm_in_features, DI) = Linear weight pre-transposed; bias: (DI,).
    Returns (B, D + DI + 1) = cat([dense, ReLU(xW+b), fm], dim=1)."""
    if len(sparse_values_per_key) == 0:
        return dense_features

    B, D = dense_features.shape
    DI = weight_t.shape[1]
    sparse_widths = [int(s.shape[1]) for s in sparse_values_per_key]
    assert weight_t.shape[0] == D + sum(sparse_widths)

    # Split the pre-transposed Linear weight per input chunk so the kernel
    # never needs the concatenated x.  (Tiny slices; stays resident in VMEM.)
    w_dense = weight_t[:D, :]
    w_chunks = []
    off = D
    for w in sparse_widths:
        w_chunks.append(weight_t[off:off + w, :])
        off += w
    b2d = bias.reshape(1, DI)

    # Batch tile: multiple of 8 (f32 sublane), capped for VMEM headroom.
    TB = min(batch_tile, _round_up(B, 8))
    grid = (pl.cdiv(B, TB),)

    def row_spec(width):
        return pl.BlockSpec((TB, width), lambda i: (i, 0))

    def resident_spec(shape):
        return pl.BlockSpec(shape, lambda i: (0, 0))

    in_specs = (
        [row_spec(D)]
        + [row_spec(w) for w in sparse_widths]
        + [resident_spec((D, DI))]
        + [resident_spec((w, DI)) for w in sparse_widths]
        + [resident_spec((1, DI))]
    )
    out_specs = (row_spec(DI), row_spec(1))
    out_shape = (
        jax.ShapeDtypeStruct((B, DI), jnp.float32),
        jax.ShapeDtypeStruct((B, 1), jnp.float32),
    )

    kernel = _make_fm_interaction_kernel(len(sparse_values_per_key))

    deep, fm = pl.pallas_call(
        kernel,
        grid=grid,
        in_specs=in_specs,
        out_specs=out_specs,
        out_shape=out_shape,
        compiler_params=pltpu.CompilerParams(
            dimension_semantics=("parallel",)),
    )(dense_features, *sparse_values_per_key, w_dense, *w_chunks, b2d)

    # Final cat([dense, deep, fm], dim=1) stays in XLA; the dense passthrough
    # never round-trips through the kernel.
    return jnp.concatenate([dense_features, deep, fm], axis=1)


def _reference(dense_features, sparse_values_per_key, weight_t, bias):
    x = jnp.concatenate([dense_features] + list(sparse_values_per_key), axis=1)
    deep = jnp.maximum(x @ weight_t + bias[None, :], 0.0)
    s = jnp.sum(x, axis=1, keepdims=True)
    ss = jnp.sum(x * x, axis=1, keepdims=True)
    fm = 0.5 * (s * s - ss)
    return jnp.concatenate([dense_features, deep, fm], axis=1)


if __name__ == "__main__":
    # Small shapes consistent with the module:
    #   B=8 batch, D=16 embedding dim, F=2 sparse features,
    #   fm_in_features = D + F*D = 48, deep_fm_dimension DI = 32.
    B, D, F, DI = 8, 16, 2, 32
    fm_in_features = D + F * D

    key = jax.random.PRNGKey(0)
    k_dense, k_sparse, k_w, k_b = jax.random.split(key, 4)

    dense_features = jax.random.uniform(k_dense, (B, D), jnp.float32)
    # KeyedTensor values: (B, D*F), split per key into (B, D) chunks.
    sparse_values = jax.random.uniform(k_sparse, (B, D * F), jnp.float32)
    sparse_per_key = [sparse_values[:, i * D:(i + 1) * D] for i in range(F)]

    # Deterministic Linear params (nn.Linear(fm_in_features, DI)), stored as W^T.
    bound = 1.0 / jnp.sqrt(fm_in_features)
    weight_t = jax.random.uniform(
        k_w, (fm_in_features, DI), jnp.float32, -bound, bound)
    bias = jax.random.uniform(k_b, (DI,), jnp.float32, -bound, bound)

    out = fm_interaction_arch(dense_features, sparse_per_key, weight_t, bias)
    out = jax.block_until_ready(out)

    ref = _reference(dense_features, sparse_per_key, weight_t, bias)
    assert out.shape == (B, D + DI + 1), out.shape
    assert jnp.allclose(out, ref, atol=1e-5, rtol=1e-5), "mismatch vs reference"

    print("KERNEL_OK")
</pallas_src>

<mosaic_0001>
module attributes {stable_mosaic.version = 11 : i64} {
  func.func @kernel(%arg0: i32, %arg1: memref<8x16xf32, #tpu.memory_space<vmem>>, %arg2: memref<8x16xf32, #tpu.memory_space<vmem>>, %arg3: memref<8x16xf32, #tpu.memory_space<vmem>>, %arg4: memref<16x32xf32, #tpu.memory_space<vmem>>, %arg5: memref<16x32xf32, #tpu.memory_space<vmem>>, %arg6: memref<16x32xf32, #tpu.memory_space<vmem>>, %arg7: memref<1x32xf32, #tpu.memory_space<vmem>>, %arg8: memref<8x32xf32, #tpu.memory_space<vmem>>, %arg9: memref<8x1xf32, #tpu.memory_space<vmem>>) attributes {dimension_semantics = [#tpu.dimension_semantics<parallel>], iteration_bounds = array<i64: 1>, scalar_prefetch = 0 : i64, scratch_operands = 0 : i64, tpu.core_type = #tpu.core_type<tc>, window_params = [{transform_indices = @transform_0, window_bounds = array<i64: 8, 16>}, {transform_indices = @transform_1, window_bounds = array<i64: 8, 16>}, {transform_indices = @transform_2, window_bounds = array<i64: 8, 16>}, {pipeline_mode = #tpu.pipeline_mode<synchronous>, transform_indices = @transform_3, window_bounds = array<i64: 16, 32>}, {pipeline_mode = #tpu.pipeline_mode<synchronous>, transform_indices = @transform_4, window_bounds = array<i64: 16, 32>}, {pipeline_mode = #tpu.pipeline_mode<synchronous>, transform_indices = @transform_5, window_bounds = array<i64: 16, 32>}, {pipeline_mode = #tpu.pipeline_mode<synchronous>, transform_indices = @transform_6, window_bounds = array<i64: 1, 32>}, {transform_indices = @transform_7, window_bounds = array<i64: 8, 32>}, {transform_indices = @transform_8, window_bounds = array<i64: 8, 1>}]} {
    %c0 = arith.constant 0 : index
    %c0_0 = arith.constant 0 : index
    %0 = vector.load %arg1[%c0, %c0_0] : memref<8x16xf32, #tpu.memory_space<vmem>>, vector<8x16xf32>
    %c0_1 = arith.constant 0 : index
    %c0_2 = arith.constant 0 : index
    %1 = vector.load %arg4[%c0_1, %c0_2] : memref<16x32xf32, #tpu.memory_space<vmem>>, vector<16x32xf32>
    %cst = arith.constant dense<0.000000e+00> : vector<8x32xf32>
    %2 = tpu.matmul %0, %1, %cst {dimension_numbers = #tpu.dot_dimension_numbers<[1], [0], [0], [1], [0, 0, 1, 1], [], []>} : vector<8x16xf32>, vector<16x32xf32>, vector<8x32xf32> -> vector<8x32xf32>
    %cst_3 = arith.constant dense<0.000000e+00> : vector<8xf32>
    %3 = vector.multi_reduction <add>, %0, %cst_3 [1] : vector<8x16xf32> to vector<8xf32>
    %4 = vector.shape_cast %3 : vector<8xf32> to vector<8x1xf32>
    %5 = arith.mulf %0, %0 : vector<8x16xf32>
    %cst_4 = arith.constant dense<0.000000e+00> : vector<8xf32>
    %6 = vector.multi_reduction <add>, %5, %cst_4 [1] : vector<8x16xf32> to vector<8xf32>
    %7 = vector.shape_cast %6 : vector<8xf32> to vector<8x1xf32>
    %c0_5 = arith.constant 0 : index
    %c0_6 = arith.constant 0 : index
    %8 = vector.load %arg2[%c0_5, %c0_6] : memref<8x16xf32, #tpu.memory_space<vmem>>, vector<8x16xf32>
    %c0_7 = arith.constant 0 : index
    %c0_8 = arith.constant 0 : index
    %9 = vector.load %arg5[%c0_7, %c0_8] : memref<16x32xf32, #tpu.memory_space<vmem>>, vector<16x32xf32>
    %cst_9 = arith.constant dense<0.000000e+00> : vector<8x32xf32>
    %10 = tpu.matmul %8, %9, %cst_9 {dimension_numbers = #tpu.dot_dimension_numbers<[1], [0], [0], [1], [0, 0, 1, 1], [], []>} : vector<8x16xf32>, vector<16x32xf32>, vector<8x32xf32> -> vector<8x32xf32>
    %11 = arith.addf %2, %10 : vector<8x32xf32>
    %cst_10 = arith.constant dense<0.000000e+00> : vector<8xf32>
    %12 = vector.multi_reduction <add>, %8, %cst_10 [1] : vector<8x16xf32> to vector<8xf32>
    %13 = vector.shape_cast %12 : vector<8xf32> to vector<8x1xf32>
    %14 = arith.addf %4, %13 : vector<8x1xf32>
    %15 = arith.mulf %8, %8 : vector<8x16xf32>
    %cst_11 = arith.constant dense<0.000000e+00> : vector<8xf32>
    %16 = vector.multi_reduction <add>, %15, %cst_11 [1] : vector<8x16xf32> to vector<8xf32>
    %17 = vector.shape_cast %16 : vector<8xf32> to vector<8x1xf32>
    %18 = arith.addf %7, %17 : vector<8x1xf32>
    %c0_12 = arith.constant 0 : index
    %c0_13 = arith.constant 0 : index
    %19 = vector.load %arg3[%c0_12, %c0_13] : memref<8x16xf32, #tpu.memory_space<vmem>>, vector<8x16xf32>
    %c0_14 = arith.constant 0 : index
    %c0_15 = arith.constant 0 : index
    %20 = vector.load %arg6[%c0_14, %c0_15] : memref<16x32xf32, #tpu.memory_space<vmem>>, vector<16x32xf32>
    %cst_16 = arith.constant dense<0.000000e+00> : vector<8x32xf32>
    %21 = tpu.matmul %19, %20, %cst_16 {dimension_numbers = #tpu.dot_dimension_numbers<[1], [0], [0], [1], [0, 0, 1, 1], [], []>} : vector<8x16xf32>, vector<16x32xf32>, vector<8x32xf32> -> vector<8x32xf32>
    %22 = arith.addf %11, %21 : vector<8x32xf32>
    %cst_17 = arith.constant dense<0.000000e+00> : vector<8xf32>
    %23 = vector.multi_reduction <add>, %19, %cst_17 [1] : vector<8x16xf32> to vector<8xf32>
    %24 = vector.shape_cast %23 : vector<8xf32> to vector<8x1xf32>
    %25 = arith.addf %14, %24 : vector<8x1xf32>
    %26 = arith.mulf %19, %19 : vector<8x16xf32>
    %cst_18 = arith.constant dense<0.000000e+00> : vector<8xf32>
    %27 = vector.multi_reduction <add>, %26, %cst_18 [1] : vector<8x16xf32> to vector<8xf32>
    %28 = vector.shape_cast %27 : vector<8xf32> to vector<8x1xf32>
    %29 = arith.addf %18, %28 : vector<8x1xf32>
    %c0_19 = arith.constant 0 : index
    %c0_20 = arith.constant 0 : index
    %30 = vector.load %arg7[%c0_19, %c0_20] : memref<1x32xf32, #tpu.memory_space<vmem>>, vector<1x32xf32>
    %31 = vector.broadcast %30 : vector<1x32xf32> to vector<8x32xf32>
    %32 = arith.addf %22, %31 : vector<8x32xf32>
    %cst_21 = arith.constant 0.000000e+00 : f32
    %33 = vector.broadcast %cst_21 : f32 to vector<8x32xf32>
    %34 = arith.maximumf %32, %33 : vector<8x32xf32>
    %35 = arith.mulf %25, %25 : vector<8x1xf32>
    %36 = arith.subf %35, %29 : vector<8x1xf32>
    %cst_22 = arith.constant 5.000000e-01 : f32
    %37 = vector.broadcast %cst_22 : f32 to vector<8x1xf32>
    %38 = arith.mulf %37, %36 : vector<8x1xf32>
    %c0_23 = arith.constant 0 : index
    %c0_24 = arith.constant 0 : index
    %39 = vector.load %arg8[%c0_23, %c0_24] : memref<8x32xf32, #tpu.memory_space<vmem>>, vector<8x32xf32>
    tpu.vector_store %arg8[%c0_23, %c0_24], %34 {strides = array<i32>} : memref<8x32xf32, #tpu.memory_space<vmem>>, vector<8x32xf32>,
    %c0_25 = arith.constant 0 : index
    %c0_26 = arith.constant 0 : index
    %40 = vector.load %arg9[%c0_25, %c0_26] : memref<8x1xf32, #tpu.memory_space<vmem>>, vector<8x1xf32>
    tpu.vector_store %arg9[%c0_25, %c0_26], %38 {strides = array<i32>} : memref<8x1xf32, #tpu.memory_space<vmem>>, vector<8x1xf32>,
    return
  }
  func.func @transform_0(%arg0: i32) -> (i32, i32) {
    %c0_i32 = arith.constant 0 : i32
    %c0_i32_0 = arith.constant 0 : i32
    return %arg0, %c0_i32 : i32, i32
  }
  func.func @transform_1(%arg0: i32) -> (i32, i32) {
    %c0_i32 = arith.constant 0 : i32
    %c0_i32_0 = arith.constant 0 : i32
    return %arg0, %c0_i32 : i32, i32
  }
  func.func @transform_2(%arg0: i32) -> (i32, i32) {
    %c0_i32 = arith.constant 0 : i32
    %c0_i32_0 = arith.constant 0 : i32
    return %arg0, %c0_i32 : i32, i32
  }
  func.func @transform_3(%arg0: i32) -> (i32, i32) {
    %c0_i32 = arith.constant 0 : i32
    %c0_i32_0 = arith.constant 0 : i32
    %c0_i32_1 = arith.constant 0 : i32
    return %c0_i32, %c0_i32_0 : i32, i32
  }
  func.func @transform_4(%arg0: i32) -> (i32, i32) {
    %c0_i32 = arith.constant 0 : i32
    %c0_i32_0 = arith.constant 0 : i32
    %c0_i32_1 = arith.constant 0 : i32
    return %c0_i32, %c0_i32_0 : i32, i32
  }
  func.func @transform_5(%arg0: i32) -> (i32, i32) {
    %c0_i32 = arith.constant 0 : i32
    %c0_i32_0 = arith.constant 0 : i32
    %c0_i32_1 = arith.constant 0 : i32
    return %c0_i32, %c0_i32_0 : i32, i32
  }
  func.func @transform_6(%arg0: i32) -> (i32, i32) {
    %c0_i32 = arith.constant 0 : i32
    %c0_i32_0 = arith.constant 0 : i32
    %c0_i32_1 = arith.constant 0 : i32
    return %c0_i32, %c0_i32_0 : i32, i32
  }
  func.func @transform_7(%arg0: i32) -> (i32, i32) {
    %c0_i32 = arith.constant 0 : i32
    %c0_i32_0 = arith.constant 0 : i32
    return %arg0, %c0_i32 : i32, i32
  }
  func.func @transform_8(%arg0: i32) -> (i32, i32) {
    %c0_i32 = arith.constant 0 : i32
    %c0_i32_0 = arith.constant 0 : i32
    return %arg0, %c0_i32 : i32, i32
  }
}

</mosaic_0001>

<llo_original>
// kernel: tpu_custom_call.1
$region0: #{tpu_custom_call.1}
  #allocation0 [shape = 'u32[]', space=smem, size = 0x4, offset = 0x4, fixed_abs, tag = 'smem constant byte address 0x4 - core index']
  #allocation1 [shape = 'u32[72,128]{1,0:T(1,128)}', space=vmem, size = 0x9000, scoped, tag = 'internal scratch']
  %s0 = inlined_call_operand.hbm [shape: f32[8,16], index: 0, kind: input, shape index: {}]
  %s1 = inlined_call_operand.hbm [shape: f32[8,16], index: 1, kind: input, shape index: {}]
  %s2 = inlined_call_operand.hbm [shape: f32[8,16], index: 2, kind: input, shape index: {}]
  %s3 = inlined_call_operand.hbm [shape: f32[16,32], index: 3, kind: input, shape index: {}]
  %s4 = inlined_call_operand.hbm [shape: f32[16,32], index: 4, kind: input, shape index: {}]
  %s5 = inlined_call_operand.hbm [shape: f32[16,32], index: 5, kind: input, shape index: {}]
  %s6 = inlined_call_operand.vmem [shape: f32[1,32], index: 6, kind: input, shape index: {}]
  %s7 = inlined_call_operand.hbm [shape: f32[8,32], index: 7, kind: output, shape index: {0}]
  %s8 = inlined_call_operand.vmem [shape: f32[8,1], index: 8, kind: output, shape index: {1}]
  %9 = xla_tuple %s7, %s8
  %s10 = sld [smem:[#allocation0]]
  $region70: #{tpu_custom_call.1} parent=0
    _
  %s12 = ssub.s32 1, %s10
  %s13 = scalar_select 0, %s12, %s10
  $region1: #{tpu_custom_call.1} parent=0
    #allocation2 [shape = 'u8[4096]{0}', space=vmem, size = 0x1000, scoped, tag = 'input window, operand 0, single buffered']
    #allocation3 [shape = 's32[1]{0}', space=sflag, size = 0x4, scoped, tag = 'scoped memory for tpu_custom_call.1']
    #allocation4 [shape = 's32[1]{0}', space=sflag, size = 0x4, scoped, tag = 'scoped memory for tpu_custom_call.1']
    #allocation5 [shape = 'u8[4096]{0}', space=vmem, size = 0x1000, scoped, tag = 'input window, operand 1, single buffered']
    #allocation6 [shape = 's32[1]{0}', space=sflag, size = 0x4, scoped, tag = 'scoped memory for tpu_custom_call.1']
    #allocation7 [shape = 'u8[4096]{0}', space=vmem, size = 0x1000, scoped, tag = 'input window, operand 2, single buffered']
    #allocation8 [shape = 'u8[8192]{0}', space=vmem, size = 0x2000, scoped, tag = 'input window, operand 3, single buffered']
    #allocation9 [shape = 's32[1]{0}', space=sflag, size = 0x4, scoped, tag = 'scoped memory for tpu_custom_call.1']
    #allocation10 [shape = 'u8[8192]{0}', space=vmem, size = 0x2000, scoped, tag = 'input window, operand 4, single buffered']
    #allocation11 [shape = 'u8[8192]{0}', space=vmem, size = 0x2000, scoped, tag = 'input window, operand 5, single buffered']
    #allocation12 [shape = 's32[1]{0}', space=sflag, size = 0x4, scoped, tag = 'scoped memory for tpu_custom_call.1']
    #allocation13 [shape = 'u8[4096]{0}', space=vmem, size = 0x1000, scoped, tag = 'output window, operand 0, single buffered']
    %14 = vsyncpa [#allocation3], 0
    %15 = vsyncpa [#allocation6], 0
    %16 = vsyncpa [#allocation9], 0
    %17 = vsyncpa [#allocation12], 0
    %18 = vsyncpa [#allocation4], 0
    // Predicated region
    $region2: #{tpu_custom_call.1} parent=1 // pred_check
      _
    $region3: #{tpu_custom_call.1} parent=1 // pred_check_branch
      %20 = sbr.rel (0) target = $region5
    $region4: #{tpu_custom_call.1} parent=1 // pred_region
      %22 = vsyncadd [#allocation3], 0
      %s24 = sshll.u32 %s0, 4
      %s25 = int_to_ptr.hbm [resolvable:$true] %s24
      %s26 = sshll.u32 [#allocation2], 4
      %s27 = int_to_ptr.vmem [resolvable:$true] %s26
      %29 = dma.hbm_to_vmem [thread:$0]  %s25, 128, %s27, [#allocation3]
    $region5: #{tpu_custom_call.1} parent=1 // pred_fallthru
      _
    // Predicated region
    $region6: #{tpu_custom_call.1} parent=1 // pred_check
      _
    $region7: #{tpu_custom_call.1} parent=1 // pred_check_branch
      %31 = sbr.rel (0) target = $region9
    $region8: #{tpu_custom_call.1} parent=1 // pred_region
      %33 = vsyncadd [#allocation6], 0
      %s35 = sshll.u32 %s1, 4
      %s36 = int_to_ptr.hbm [resolvable:$true] %s35
      %s37 = sshll.u32 [#allocation5], 4
      %s38 = int_to_ptr.vmem [resolvable:$true] %s37
      %40 = dma.hbm_to_vmem [thread:$0]  %s36, 128, %s38, [#allocation6]
    $region9: #{tpu_custom_call.1} parent=1 // pred_fallthru
      _
    // Predicated region
    $region10: #{tpu_custom_call.1} parent=1 // pred_check
      _
    $region11: #{tpu_custom_call.1} parent=1 // pred_check_branch
      %42 = sbr.rel (0) target = $region13
    $region12: #{tpu_custom_call.1} parent=1 // pred_region
      %44 = vsyncadd [#allocation6], 0
      %s46 = sshll.u32 %s2, 4
      %s47 = int_to_ptr.hbm [resolvable:$true] %s46
      %s48 = sshll.u32 [#allocation7], 4
      %s49 = int_to_ptr.vmem [resolvable:$true] %s48
      %51 = dma.hbm_to_vmem [thread:$0]  %s47, 128, %s49, [#allocation6]
    $region13: #{tpu_custom_call.1} parent=1 // pred_fallthru
      _
    // Predicated region
    $region14: #{tpu_custom_call.1} parent=1 // pred_check
      _
    $region15: #{tpu_custom_call.1} parent=1 // pred_check_branch
      %53 = sbr.rel (0) target = $region17
    $region16: #{tpu_custom_call.1} parent=1 // pred_region
      %55 = vsyncadd [#allocation9], 0
      %s56 = sshll.u32 %s3, 4
      %s57 = int_to_ptr.hbm [resolvable:$true] %s56
      %s58 = sshll.u32 [#allocation8], 4
      %s59 = int_to_ptr.vmem [resolvable:$true] %s58
      %64 = dma.hbm_to_vmem [thread:$0]  %s57, 256, %s59, [#allocation9], 128, 128, 8
    $region17: #{tpu_custom_call.1} parent=1 // pred_fallthru
      _
    // Predicated region
    $region18: #{tpu_custom_call.1} parent=1 // pred_check
      _
    $region19: #{tpu_custom_call.1} parent=1 // pred_check_branch
      %66 = sbr.rel (0) target = $region21
    $region20: #{tpu_custom_call.1} parent=1 // pred_region
      %68 = vsyncadd [#allocation9], 0
      %s69 = sshll.u32 %s4, 4
      %s70 = int_to_ptr.hbm [resolvable:$true] %s69
      %s71 = sshll.u32 [#allocation10], 4
      %s72 = int_to_ptr.vmem [resolvable:$true] %s71
      %77 = dma.hbm_to_vmem [thread:$0]  %s70, 256, %s72, [#allocation9], 128, 128, 8
    $region21: #{tpu_custom_call.1} parent=1 // pred_fallthru
      _
    // Predicated region
    $region22: #{tpu_custom_call.1} parent=1 // pred_check
      _
    $region23: #{tpu_custom_call.1} parent=1 // pred_check_branch
      %79 = sbr.rel (0) target = $region25
    $region24: #{tpu_custom_call.1} parent=1 // pred_region
      %81 = vsyncadd [#allocation12], 0
      %s82 = sshll.u32 %s5, 4
      %s83 = int_to_ptr.hbm [resolvable:$true] %s82
      %s84 = sshll.u32 [#allocation11], 4
      %s85 = int_to_ptr.vmem [resolvable:$true] %s84
      %90 = dma.hbm_to_vmem [thread:$0]  %s83, 256, %s85, [#allocation12], 128, 128, 8
    $region25: #{tpu_custom_call.1} parent=1 // pred_fallthru
      _
    // Predicated region
    $region26: #{tpu_custom_call.1} parent=1 // pred_check
      _
    $region27: #{tpu_custom_call.1} parent=1 // pred_check_branch
      %92 = sbr.rel (0) target = $region29
    $region28: #{tpu_custom_call.1} parent=1 // pred_region
      _
    $region29: #{tpu_custom_call.1} parent=1 // pred_fallthru
      _
    // Predicated region
    $region30: #{tpu_custom_call.1} parent=1 // pred_check
      _
    $region31: #{tpu_custom_call.1} parent=1 // pred_check_branch
      %94 = sbr.rel (0) target = $region33
    $region32: #{tpu_custom_call.1} parent=1 // pred_region
      %96 = dma.done [#allocation3], 128
    $region33: #{tpu_custom_call.1} parent=1 // pred_fallthru
      _
    // Predicated region
    $region34: #{tpu_custom_call.1} parent=1 // pred_check
      _
    $region35: #{tpu_custom_call.1} parent=1 // pred_check_branch
      %98 = sbr.rel (0) target = $region37
    $region36: #{tpu_custom_call.1} parent=1 // pred_region
      %100 = dma.done [#allocation6], 128
    $region37: #{tpu_custom_call.1} parent=1 // pred_fallthru
      _
    // Predicated region
    $region38: #{tpu_custom_call.1} parent=1 // pred_check
      _
    $region39: #{tpu_custom_call.1} parent=1 // pred_check_branch
      %102 = sbr.rel (0) target = $region41
    $region40: #{tpu_custom_call.1} parent=1 // pred_region
      %104 = dma.done [#allocation6], 128
    $region41: #{tpu_custom_call.1} parent=1 // pred_fallthru
      _
    // Predicated region
    $region42: #{tpu_custom_call.1} parent=1 // pred_check
      _
    $region43: #{tpu_custom_call.1} parent=1 // pred_check_branch
      %106 = sbr.rel (0) target = $region45
    $region44: #{tpu_custom_call.1} parent=1 // pred_region
      %108 = dma.done [#allocation9], 256
    $region45: #{tpu_custom_call.1} parent=1 // pred_fallthru
      _
    // Predicated region
    $region46: #{tpu_custom_call.1} parent=1 // pred_check
      _
    $region47: #{tpu_custom_call.1} parent=1 // pred_check_branch
      %110 = sbr.rel (0) target = $region49
    $region48: #{tpu_custom_call.1} parent=1 // pred_region
      %112 = dma.done [#allocation9], 256
    $region49: #{tpu_custom_call.1} parent=1 // pred_fallthru
      _
    // Predicated region
    $region50: #{tpu_custom_call.1} parent=1 // pred_check
      _
    $region51: #{tpu_custom_call.1} parent=1 // pred_check_branch
      %114 = sbr.rel (0) target = $region53
    $region52: #{tpu_custom_call.1} parent=1 // pred_region
      %116 = dma.done [#allocation12], 256
    $region53: #{tpu_custom_call.1} parent=1 // pred_fallthru
      _
    %v117 = vld [vmem:[#allocation2] sm:$0xff]
    %v118 = vld [vmem:[#allocation8] sm:$0xff]
    %v119 = vld [vmem:[#allocation8 + $0x8] sm:$0xff]
    %vm120 = vcmask 130048
    %v121 = vsel %vm120, %v117, 0.0
    %122 = vadd.xlane.f32.xlu0 %v121
    %v123 = vpop.xlane.xlu0 %122
    %v124 = vmul.f32 %v117, %v117
    %v125 = vsel %vm120, %v124, 0.0
    %126 = vadd.xlane.f32.xlu0 %v125
    %v127 = vpop.xlane.xlu0 %126
    %v128 = vld [vmem:[#allocation5] sm:$0xff]
    %v129 = vld [vmem:[#allocation10] sm:$0xff]
    %v130 = vld [vmem:[#allocation10 + $0x8] sm:$0xff]
    %v132 = vsel %vm120, %v128, 0
    %134 = vmatpush.msra.mxu0 0.0
    %135 = vmatpush.msra.mxu0 0.0
    %136 = vmatpush.msra.mxu0 0.0
    %137 = vmatpush.msra.mxu0 0.0
    %138 = vmatpush.msra.mxu0 0.0
    %139 = vmatpush.msra.mxu0 0.0
    %140 = vmatpush.msra.mxu0 0.0
    %141 = vmatpush.msra.mxu0 0.0
    %142 = vmatpush.msra.mxu0 0.0
    %143 = vmatpush.msra.mxu0 0.0
    %144 = vmatpush.msra.mxu0 0.0
    %145 = vmatpush.msra.mxu0 0.0
    %146 = vmatpush.msra.mxu0 0.0
    %147 = vmatpush.msra.mxu0 0.0
    %148 = vmatpush.msra.mxu0 %v130
    %149 = vmatpush.msra.mxu0 %v129
    %150 = vmatmul.f32.gmra.mxu0 %v132
    %v151 = vpop.f32.mrf.mxu0
    %v152 = vadd.f32 0.0, %v151
    %153 = vdwg.mxu0
    %v155 = vsel %vm120, %v117, 0
    %157 = vmatpush.msra.mxu0 0.0
    %158 = vmatpush.msra.mxu0 0.0
    %159 = vmatpush.msra.mxu0 0.0
    %160 = vmatpush.msra.mxu0 0.0
    %161 = vmatpush.msra.mxu0 0.0
    %162 = vmatpush.msra.mxu0 0.0
    %163 = vmatpush.msra.mxu0 0.0
    %164 = vmatpush.msra.mxu0 0.0
    %165 = vmatpush.msra.mxu0 0.0
    %166 = vmatpush.msra.mxu0 0.0
    %167 = vmatpush.msra.mxu0 0.0
    %168 = vmatpush.msra.mxu0 0.0
    %169 = vmatpush.msra.mxu0 0.0
    %170 = vmatpush.msra.mxu0 0.0
    %171 = vmatpush.msra.mxu0 %v119
    %172 = vmatpush.msra.mxu0 %v118
    %173 = vmatmul.f32.gmra.mxu0 %v155
    %v174 = vpop.f32.mrf.mxu0
    %v175 = vadd.f32 %v152, %v174
    %176 = vdwg.mxu0
    %v177 = vsel %vm120, %v128, 0.0
    %178 = vadd.xlane.f32.xlu0 %v177
    %v179 = vpop.xlane.xlu0 %178
    %v180 = vadd.f32 %v123, %v179
    %v181 = vmul.f32 %v128, %v128
    %v182 = vsel %vm120, %v181, 0.0
    %183 = vadd.xlane.f32.xlu0 %v182
    %v184 = vpop.xlane.xlu0 %183
    %v185 = vadd.f32 %v127, %v184
    %v186 = vld [vmem:[#allocation7] sm:$0xff]
    %v187 = vld [vmem:[#allocation11] sm:$0xff]
    %v188 = vld [vmem:[#allocation11 + $0x8] sm:$0xff]
    %v190 = vsel %vm120, %v186, 0
    %192 = vmatpush.msra.mxu0 0.0
    %193 = vmatpush.msra.mxu0 0.0
    %194 = vmatpush.msra.mxu0 0.0
    %195 = vmatpush.msra.mxu0 0.0
    %196 = vmatpush.msra.mxu0 0.0
    %197 = vmatpush.msra.mxu0 0.0
    %198 = vmatpush.msra.mxu0 0.0
    %199 = vmatpush.msra.mxu0 0.0
    %200 = vmatpush.msra.mxu0 0.0
    %201 = vmatpush.msra.mxu0 0.0
    %202 = vmatpush.msra.mxu0 0.0
    %203 = vmatpush.msra.mxu0 0.0
    %204 = vmatpush.msra.mxu0 0.0
    %205 = vmatpush.msra.mxu0 0.0
    %206 = vmatpush.msra.mxu0 %v188
    %207 = vmatpush.msra.mxu0 %v187
    %208 = vmatmul.f32.gmra.mxu0 %v190
    %v209 = vpop.f32.mrf.mxu0
    %v210 = vadd.f32 0.0, %v209
    %211 = vdwg.mxu0
    %v212 = vadd.f32 %v175, %v210
    %v213 = vsel %vm120, %v186, 0.0
    %214 = vadd.xlane.f32.xlu0 %v213
    %v215 = vpop.xlane.xlu0 %214
    %v216 = vadd.f32 %v180, %v215
    %v217 = vmul.f32 %v186, %v186
    %v218 = vsel %vm120, %v217, 0.0
    %219 = vadd.xlane.f32.xlu0 %v218
    %v220 = vpop.xlane.xlu0 %219
    %v221 = vadd.f32 %v185, %v220
    %v222 = vld [vmem:[%s6] sm:$0x1]
    %v224 = vperm.slane %v222, 0
    %v226 = vadd.f32 %v212, %v224
    %v227 = vmax.f32 %v226, 0.0
    %v228 = vmul.f32 %v216, %v216
    %v229 = vsub.f32 %v228, %v221
    %v230 = vmul.f32 %v229, 0.5
    %vm231 = vcmask 261120
    %232 = vst.msk [vmem:[#allocation13] sm:$0xff] %vm231, %v227
    %vm233 = vcmask 7168
    %234 = vst.msk [vmem:[%s8] sm:$0xff] %vm233, %v230
    // Predicated region
    $region54: #{tpu_custom_call.1} parent=1 // pred_check
      _
    $region55: #{tpu_custom_call.1} parent=1 // pred_check_branch
      %236 = sbr.rel (0) target = $region57
    $region56: #{tpu_custom_call.1} parent=1 // pred_region
      %238 = vsyncadd [#allocation4], 0
      %s240 = sshll.u32 [#allocation13], 4
      %s241 = int_to_ptr.vmem [resolvable:$true] %s240
      %s242 = sshll.u32 %s7, 4
      %s243 = int_to_ptr.hbm [resolvable:$true] %s242
      %245 = dma.vmem_to_hbm [thread:$0]  %s241, 128, %s243, [#allocation4]
    $region57: #{tpu_custom_call.1} parent=1 // pred_fallthru
      _
    // Predicated region
    $region58: #{tpu_custom_call.1} parent=1 // pred_check
      _
    $region59: #{tpu_custom_call.1} parent=1 // pred_check_branch
      %247 = sbr.rel (0) target = $region61
    $region60: #{tpu_custom_call.1} parent=1 // pred_region
      _
    $region61: #{tpu_custom_call.1} parent=1 // pred_fallthru
      _
    // Predicated region
    $region62: #{tpu_custom_call.1} parent=1 // pred_check
      _
    $region63: #{tpu_custom_call.1} parent=1 // pred_check_branch
      %249 = sbr.rel (0) target = $region65
    $region64: #{tpu_custom_call.1} parent=1 // pred_region
      %251 = dma.done [#allocation4], 128
    $region65: #{tpu_custom_call.1} parent=1 // pred_fallthru
      _
    // Predicated region
    $region66: #{tpu_custom_call.1} parent=1 // pred_check
      _
    $region67: #{tpu_custom_call.1} parent=1 // pred_check_branch
      %253 = sbr.rel (0) target = $region69
    $region68: #{tpu_custom_call.1} parent=1 // pred_region
      _
    $region69: #{tpu_custom_call.1} parent=1 // pred_fallthru
      _
    %254 = vsyncpa [#allocation3], 1
    %255 = vsyncpa [#allocation6], 1
    %256 = vsyncpa [#allocation9], 1
    %257 = vsyncpa [#allocation12], 1
    %258 = vsyncpa [#allocation4], 1

</llo_original>
